<compile_context>
chip_gen: v7x
topology: tpu7x:2x2x1
jax: 0.10.0
libtpu: 0.0.40
codegen_flags: <defaults>
</compile_context>

<pallas_src>
import jax
import jax.numpy as jnp
from jax.experimental import pallas as pl
from jax.experimental.pallas import tpu as pltpu

BN_EPS = 1e-5
NEG_SLOPE = 0.2
SPATIAL = 4                  # repeat(4, 4, 1, 1) => fixed 4x4 spatial grid
HW = SPATIAL * SPATIAL       # 16


def concat_embed_kernel(embed_ref, w_ref, params_ref, rep_mat_ref, rep_ref):
    # embed_ref:   (B, E+1)    float32  -- embedding with ones column appended
    # w_ref:       (E+1, P)    float32  -- Linear weight with bias row appended
    # params_ref:  (2, P)      float32  -- rows: [gamma, beta]
    # rep_mat_ref: (P, P*HW)   float32  -- block-of-ones replication matrix
    # rep_ref:     (B, P*HW)   float32  -- replicated projection, lane-dense
    gamma = params_ref[0:1, :]
    beta = params_ref[1:2, :]

    # ---- Linear (bias folded into the matmul) on the MXU ----
    y = jnp.dot(embed_ref[...], w_ref[...], preferred_element_type=jnp.float32)

    # ---- BatchNorm1d, training-mode batch stats (stable two-pass form) ----
    mean = jnp.mean(y, axis=0, keepdims=True)
    d = y - mean
    var = jnp.mean(d * d, axis=0, keepdims=True)        # biased variance
    scale = gamma * jax.lax.rsqrt(var + BN_EPS)
    z = d * scale + beta

    # ---- LeakyReLU(0.2) on the small (B, P) tile ----
    z = jnp.where(z > 0, z, NEG_SLOPE * z)

    # ---- replicate each channel across the 4x4 grid via MXU:  z @ R ----
    # rep[b, p*HW + t] = z[b, p]; output is a clean 256-lane unmasked store.
    rep_ref[...] = jnp.dot(z, rep_mat_ref[...],
                           preferred_element_type=jnp.float32)


def concat_embed(inp, embed, w, b, gamma, beta):
    """inp: (B, C, 4, 4) NCHW; embed: (B, E). Returns (B, C + P, 4, 4)."""
    B, C, H, W = inp.shape
    assert H == SPATIAL and W == SPATIAL, "repeat(4,4,1,1) implies 4x4 spatial"
    E, P = w.shape

    # Fold Linear bias into the matmul.
    embed_aug = jnp.concatenate([embed, jnp.ones((B, 1), embed.dtype)], axis=1)
    w_aug = jnp.concatenate([w, b[None, :]], axis=0)          # (E+1, P)
    params = jnp.stack([gamma, beta], axis=0)                 # (2, P)

    # Block-of-ones replication matrix: R[p, q*HW + t] = (p == q).
    rep_mat = jnp.repeat(jnp.eye(P, dtype=inp.dtype), HW, axis=1)  # (P, P*HW)

    rep_flat = pl.pallas_call(
        concat_embed_kernel,
        out_shape=jax.ShapeDtypeStruct((B, P * H * W), inp.dtype),
        in_specs=[pl.BlockSpec(memory_space=pltpu.MemorySpace.VMEM)] * 4,
        out_specs=pl.BlockSpec(memory_space=pltpu.MemorySpace.VMEM),
    )(embed_aug, w_aug, params, rep_mat)

    # Lane-dense (B, P*HW) is NCHW-contiguous for (B, P, 4, 4).
    rep = rep_flat.reshape(B, P, H, W)

    # Channel concat in the wrapper: the conv feature map never transits the
    # kernel (no HBM->VMEM->HBM pass-through copy inside the pallas call).
    return jnp.concatenate([inp, rep], axis=1)


def concat_embed_reference(inp, embed, w, b, gamma, beta):
    """Pure-JAX reference mirroring the PyTorch forward (train-mode BN)."""
    y = embed @ w + b
    mean = jnp.mean(y, axis=0, keepdims=True)
    var = jnp.mean((y - mean) ** 2, axis=0, keepdims=True)
    z = (y - mean) / jnp.sqrt(var + BN_EPS) * gamma + beta
    z = jnp.where(z > 0, z, NEG_SLOPE * z)                       # (B, P)
    rep = jnp.broadcast_to(z[:, :, None, None], z.shape + (SPATIAL, SPATIAL))
    return jnp.concatenate([inp, rep], axis=1)


if __name__ == "__main__":
    B, C = 2, 4            # batch, input feature-map channels
    H = W = SPATIAL        # spatial size forced by repeat(4, 4, 1, 1)
    EMBED_DIM = 32
    PROJ_DIM = 16

    key = jax.random.PRNGKey(0)
    k_inp, k_emb, k_w, k_b, k_g, k_beta = jax.random.split(key, 6)

    inp = jax.random.normal(k_inp, (B, C, H, W), dtype=jnp.float32)
    embed = jax.random.normal(k_emb, (B, EMBED_DIM), dtype=jnp.float32)

    # Deterministic synthetic parameters (Linear + BatchNorm1d affine).
    w = jax.random.normal(k_w, (EMBED_DIM, PROJ_DIM), dtype=jnp.float32) * 0.1
    b = jax.random.normal(k_b, (PROJ_DIM,), dtype=jnp.float32) * 0.1
    gamma = 1.0 + 0.1 * jax.random.normal(k_g, (PROJ_DIM,), dtype=jnp.float32)
    beta = 0.1 * jax.random.normal(k_beta, (PROJ_DIM,), dtype=jnp.float32)

    out = concat_embed(inp, embed, w, b, gamma, beta)
    out = jax.block_until_ready(out)

    ref = concat_embed_reference(inp, embed, w, b, gamma, beta)
    assert out.shape == (B, C + PROJ_DIM, H, W), out.shape
    assert jnp.allclose(out, ref, rtol=1e-5, atol=1e-5), "mismatch vs reference"

    print("KERNEL_OK")
</pallas_src>

<mosaic_0001>
module attributes {stable_mosaic.version = 11 : i64} {
  func.func @concat_embed_kernel(%arg0: memref<2x33xf32, #tpu.memory_space<vmem>>, %arg1: memref<33x16xf32, #tpu.memory_space<vmem>>, %arg2: memref<2x16xf32, #tpu.memory_space<vmem>>, %arg3: memref<16x256xf32, #tpu.memory_space<vmem>>, %arg4: memref<2x256xf32, #tpu.memory_space<vmem>>) attributes {dimension_semantics = [], scalar_prefetch = 0 : i64, scratch_operands = 0 : i64, tpu.core_type = #tpu.core_type<tc>} {
    %c0 = arith.constant 0 : index
    %c0_0 = arith.constant 0 : index
    %0 = vector.load %arg2[%c0, %c0_0] : memref<2x16xf32, #tpu.memory_space<vmem>>, vector<1x16xf32>
    %c1 = arith.constant 1 : index
    %c0_1 = arith.constant 0 : index
    %1 = vector.load %arg2[%c1, %c0_1] : memref<2x16xf32, #tpu.memory_space<vmem>>, vector<1x16xf32>
    %c0_2 = arith.constant 0 : index
    %c0_3 = arith.constant 0 : index
    %2 = vector.load %arg0[%c0_2, %c0_3] : memref<2x33xf32, #tpu.memory_space<vmem>>, vector<2x33xf32>
    %c0_4 = arith.constant 0 : index
    %c0_5 = arith.constant 0 : index
    %3 = vector.load %arg1[%c0_4, %c0_5] : memref<33x16xf32, #tpu.memory_space<vmem>>, vector<33x16xf32>
    %cst = arith.constant dense<0.000000e+00> : vector<2x16xf32>
    %4 = tpu.matmul %2, %3, %cst {dimension_numbers = #tpu.dot_dimension_numbers<[1], [0], [0], [1], [0, 0, 1, 1], [], []>} : vector<2x33xf32>, vector<33x16xf32>, vector<2x16xf32> -> vector<2x16xf32>
    %cst_6 = arith.constant dense<0.000000e+00> : vector<16xf32>
    %5 = vector.multi_reduction <add>, %4, %cst_6 [0] : vector<2x16xf32> to vector<16xf32>
    %6 = vector.shape_cast %5 : vector<16xf32> to vector<1x16xf32>
    %cst_7 = arith.constant 2.000000e+00 : f32
    %7 = vector.broadcast %cst_7 : f32 to vector<1x16xf32>
    %8 = arith.divf %6, %7 : vector<1x16xf32>
    %9 = vector.broadcast %8 : vector<1x16xf32> to vector<2x16xf32>
    %10 = arith.subf %4, %9 : vector<2x16xf32>
    %11 = arith.mulf %10, %10 : vector<2x16xf32>
    %cst_8 = arith.constant dense<0.000000e+00> : vector<16xf32>
    %12 = vector.multi_reduction <add>, %11, %cst_8 [0] : vector<2x16xf32> to vector<16xf32>
    %13 = vector.shape_cast %12 : vector<16xf32> to vector<1x16xf32>
    %cst_9 = arith.constant 2.000000e+00 : f32
    %14 = vector.broadcast %cst_9 : f32 to vector<1x16xf32>
    %15 = arith.divf %13, %14 : vector<1x16xf32>
    %cst_10 = arith.constant 9.99999974E-6 : f32
    %16 = vector.broadcast %cst_10 : f32 to vector<1x16xf32>
    %17 = arith.addf %15, %16 : vector<1x16xf32>
    %18 = math.rsqrt %17 : vector<1x16xf32>
    %19 = arith.mulf %0, %18 : vector<1x16xf32>
    %20 = vector.broadcast %19 : vector<1x16xf32> to vector<2x16xf32>
    %21 = arith.mulf %10, %20 : vector<2x16xf32>
    %22 = vector.broadcast %1 : vector<1x16xf32> to vector<2x16xf32>
    %23 = arith.addf %21, %22 : vector<2x16xf32>
    %cst_11 = arith.constant 0.000000e+00 : f32
    %24 = vector.broadcast %cst_11 : f32 to vector<2x16xf32>
    %25 = arith.cmpf ogt, %23, %24 : vector<2x16xf32>
    %cst_12 = arith.constant 2.000000e-01 : f32
    %26 = vector.broadcast %cst_12 : f32 to vector<2x16xf32>
    %27 = arith.mulf %26, %23 : vector<2x16xf32>
    %28 = arith.select %25, %23, %27 : vector<2x16xi1>, vector<2x16xf32>
    %c0_13 = arith.constant 0 : index
    %c0_14 = arith.constant 0 : index
    %29 = vector.load %arg3[%c0_13, %c0_14] : memref<16x256xf32, #tpu.memory_space<vmem>>, vector<16x256xf32>
    %cst_15 = arith.constant dense<0.000000e+00> : vector<2x256xf32>
    %30 = tpu.matmul %28, %29, %cst_15 {dimension_numbers = #tpu.dot_dimension_numbers<[1], [0], [0], [1], [0, 0, 1, 1], [], []>} : vector<2x16xf32>, vector<16x256xf32>, vector<2x256xf32> -> vector<2x256xf32>
    %c0_16 = arith.constant 0 : index
    %c0_17 = arith.constant 0 : index
    %31 = vector.load %arg4[%c0_16, %c0_17] : memref<2x256xf32, #tpu.memory_space<vmem>>, vector<2x256xf32>
    tpu.vector_store %arg4[%c0_16, %c0_17], %30 {strides = array<i32>} : memref<2x256xf32, #tpu.memory_space<vmem>>, vector<2x256xf32>,
    return
  }
}

</mosaic_0001>

<llo_original>
// kernel: tpu_custom_call.1
$region0: #{tpu_custom_call.1}
  #allocation0 [shape = 'u32[]', space=smem, size = 0x4, offset = 0x4, fixed_abs, tag = 'smem constant byte address 0x4 - core index']
  #allocation1 [shape = 'u32[144,128]{1,0:T(1,128)}', space=vmem, size = 0x12000, scoped, tag = 'internal scratch']
  %s0 = inlined_call_operand.vmem [shape: f32[2,33], index: 0, kind: input, shape index: {}]
  %s1 = inlined_call_operand.vmem [shape: f32[33,16], index: 1, kind: input, shape index: {}]
  %s2 = inlined_call_operand.vmem [shape: f32[2,16], index: 2, kind: input, shape index: {}]
  %s3 = inlined_call_operand.vmem [shape: f32[16,256], index: 3, kind: input, shape index: {}]
  %s4 = inlined_call_operand.hbm [shape: f32[2,256], index: 4, kind: output, shape index: {}]
  %s5 = sld [smem:[#allocation0]]
  $region26: #{tpu_custom_call.1} parent=0
    _
  %s7 = ssub.s32 1, %s5
  %s8 = scalar_select 0, %s7, %s5
  $region1: #{tpu_custom_call.1} parent=0
    #allocation2 [shape = 'u8[2048]{0}', space=vmem, size = 0x800, scoped, tag = 'output window, operand 0, single buffered']
    #allocation3 [shape = 's32[1]{0}', space=sflag, size = 0x4, scoped, tag = 'scoped memory for tpu_custom_call.1']
    %9 = vsyncpa [#allocation3], 0
    // Predicated region
    $region2: #{tpu_custom_call.1} parent=1 // pred_check
      _
    $region3: #{tpu_custom_call.1} parent=1 // pred_check_branch
      %11 = sbr.rel (0) target = $region5
    $region4: #{tpu_custom_call.1} parent=1 // pred_region
      _
    $region5: #{tpu_custom_call.1} parent=1 // pred_fallthru
      _
    // Predicated region
    $region6: #{tpu_custom_call.1} parent=1 // pred_check
      _
    $region7: #{tpu_custom_call.1} parent=1 // pred_check_branch
      %13 = sbr.rel (0) target = $region9
    $region8: #{tpu_custom_call.1} parent=1 // pred_region
      _
    $region9: #{tpu_custom_call.1} parent=1 // pred_fallthru
      _
    // Predicated region
    $region10: #{tpu_custom_call.1} parent=1 // pred_check
      _
    $region11: #{tpu_custom_call.1} parent=1 // pred_check_branch
      %15 = sbr.rel (0) target = $region13
    $region12: #{tpu_custom_call.1} parent=1 // pred_region
      _
    $region13: #{tpu_custom_call.1} parent=1 // pred_fallthru
      _
    // Predicated region
    $region14: #{tpu_custom_call.1} parent=1 // pred_check
      _
    $region15: #{tpu_custom_call.1} parent=1 // pred_check_branch
      %17 = sbr.rel (0) target = $region17
    $region16: #{tpu_custom_call.1} parent=1 // pred_region
      _
    $region17: #{tpu_custom_call.1} parent=1 // pred_fallthru
      _
    %v18 = vld [vmem:[%s2] sm:$0x1]
    %v19 = vld [vmem:[%s2 + $0x1] sm:$0x1]
    %v20 = vld [vmem:[%s0] sm:$0x3]
    %v21 = vld [vmem:[%s1] sm:$0xff]
    %v22 = vld [vmem:[%s1 + $0x8] sm:$0xff]
    %v23 = vld [vmem:[%s1 + $0x10] sm:$0xff]
    %v24 = vld [vmem:[%s1 + $0x18] sm:$0xff]
    %v25 = vld [vmem:[%s1 + $0x20] sm:$0x1]
    %vm26 = vcmask 269312
    %v28 = vsel %vm26, %v20, 0
    %vm30 = vcmask 1040384
    %v32 = vsel %vm30, %v25, 0
    %34 = vmatprep.subr.mxu0 0.0
    %35 = vmatpush1.msra.mxu0 %v21
    %36 = vmatprep.subr.mxu0 0.0
    %37 = vmatpush1.msra.mxu0 %v22
    %38 = vmatprep.subr.mxu0 0.0
    %39 = vmatpush1.msra.mxu0 %v23
    %40 = vmatprep.subr.mxu0 0.0
    %41 = vmatpush1.msra.mxu0 %v24
    %42 = vmatprep.subr.mxu0 0.0
    %43 = vmatpush1.msra.mxu0 %v32
    %44 = vmatprep.subr.mxu0 0.0
    %45 = vmatpush1.msra.mxu0 0.0
    %46 = vmatprep.subr.mxu0 0.0
    %47 = vmatpush1.msra.mxu0 0.0
    %48 = vmatprep.subr.mxu0 0.0
    %49 = vmatpush1.msra.mxu0 0.0
    %50 = vmatprep.subr.mxu0 0.0
    %51 = vmatpush1.msra.mxu0 0.0
    %52 = vmatprep.subr.mxu0 0.0
    %53 = vmatpush1.msra.mxu0 0.0
    %54 = vmatprep.subr.mxu0 0.0
    %55 = vmatpush1.msra.mxu0 0.0
    %56 = vmatprep.subr.mxu0 0.0
    %57 = vmatpush1.msra.mxu0 0.0
    %58 = vmatprep.subr.mxu0 0.0
    %59 = vmatpush1.msra.mxu0 0.0
    %60 = vmatprep.subr.mxu0 0.0
    %61 = vmatpush1.msra.mxu0 0.0
    %62 = vmatprep.subr.mxu0 0.0
    %63 = vmatpush1.msra.mxu0 0.0
    %64 = vmatprep.subr.mxu0 0.0
    %65 = vmatpush1.msra.mxu0 0.0
    %66 = vmatprep.subr.mxu0 0.0
    %67 = vmatpush1.msra.mxu0 0.0
    %68 = vmatprep.subr.mxu0 0.0
    %69 = vmatpush1.msra.mxu0 0.0
    %70 = vmatprep.subr.mxu0 0.0
    %71 = vmatpush1.msra.mxu0 0.0
    %72 = vmatprep.subr.mxu0 0.0
    %73 = vmatpush1.msra.mxu0 0.0
    %74 = vmatprep.subr.mxu0 0.0
    %75 = vmatpush1.msra.mxu0 0.0
    %76 = vmatprep.subr.mxu0 0.0
    %77 = vmatpush1.msra.mxu0 0.0
    %78 = vmatprep.subr.mxu0 0.0
    %79 = vmatpush1.msra.mxu0 0.0
    %80 = vmatprep.subr.mxu0 0.0
    %81 = vmatpush1.msra.mxu0 0.0
    %82 = vmatprep.subr.mxu0 0.0
    %83 = vmatpush1.msra.mxu0 0.0
    %84 = vmatprep.subr.mxu0 0.0
    %85 = vmatpush1.msra.mxu0 0.0
    %86 = vmatprep.subr.mxu0 0.0
    %87 = vmatpush1.msra.mxu0 0.0
    %88 = vmatprep.subr.mxu0 0.0
    %89 = vmatpush1.msra.mxu0 0.0
    %90 = vmatprep.subr.mxu0 0.0
    %91 = vmatpush1.msra.mxu0 0.0
    %92 = vmatprep.subr.mxu0 0.0
    %93 = vmatpush1.msra.mxu0 0.0
    %94 = vmatprep.subr.mxu0 0.0
    %95 = vmatpush1.msra.mxu0 0.0
    %96 = vmatprep.subr.mxu0 0.0
    %97 = vmatpush1.msra.mxu0 0.0
    %98 = vmatprep.mubr.f32.mxu0 0.0
    %99 = vmatmul.mubr.f32.gmra.mrb[0].mxu0 %v28
    %v100 = vpop.f32.mrb[0].mxu0
    %v101 = vadd.f32 0.0, %v100
    %v102 = vpop.f32.mrb[0].mxu0
    %103 = vdwg.mxu0
    %vm104 = vcmask 123904
    %v105 = vsel %vm104, %v101, 0.0
    %v106 = vrot.slane %v105, 4
    %v107 = vadd.f32 %v105, %v106
    %v108 = vrot.slane %v107, 2
    %v109 = vadd.f32 %v107, %v108
    %v110 = vrot.slane %v109, 1
    %v111 = vadd.f32 %v109, %v110
    %v112 = vrcp.pop 2.0
    %v113 = vmul.f32 %v111, %v112
    %v114 = vsub.f32 %v101, %v113
    %v115 = vmul.f32 %v114, %v114
    %v116 = vsel %vm104, %v115, 0.0
    %v117 = vrot.slane %v116, 4
    %v118 = vadd.f32 %v116, %v117
    %v119 = vrot.slane %v118, 2
    %v120 = vadd.f32 %v118, %v119
    %v121 = vrot.slane %v120, 1
    %v122 = vadd.f32 %v120, %v121
    %v123 = vmul.f32 %v122, %v112
    %v124 = vadd.f32 %v123, 1e-05
    %v125 = vrsqrt.pop %v124
    %v126 = vmul.f32 %v18, %v125
    %v127 = vlaneseq
    %v128 = vshrl.u32 %v127, 7
    %v129 = vsub.s32 0, %v128
    %v130 = vrot.slane %v126, %v129
    %v131 = vmul.f32 %v114, %v130
    %v132 = vlaneseq
    %v133 = vshrl.u32 %v132, 7
    %v134 = vsub.s32 0, %v133
    %v135 = vrot.slane %v19, %v134
    %v136 = vadd.f32 %v131, %v135
    %vm137 = vcmp.gt.f32.partialorder %v136, 0.0
    %v138 = vmul.f32 %v136, 0.2
    %v139 = vsel %vm137, %v136, %v138
    %v140 = vld [vmem:[%s3] sm:$0xff]
    %v141 = vld [vmem:[%s3 + $0x8] sm:$0xff]
    %v142 = vld [vmem:[%s3 + $0x10] sm:$0xff]
    %v143 = vld [vmem:[%s3 + $0x18] sm:$0xff]
    %vm144 = vcmask 130048
    %v146 = vsel %vm144, %v139, 0
    %148 = vmatprep.subr.mxu0 %v141
    %149 = vmatpush1.msra.mxu0 %v140
    %150 = vmatprep.subr.mxu0 %v143
    %151 = vmatpush1.msra.mxu0 %v142
    %152 = vmatprep.subr.mxu0 0.0
    %153 = vmatpush1.msra.mxu0 0.0
    %154 = vmatprep.subr.mxu0 0.0
    %155 = vmatpush1.msra.mxu0 0.0
    %156 = vmatprep.subr.mxu0 0.0
    %157 = vmatpush1.msra.mxu0 0.0
    %158 = vmatprep.subr.mxu0 0.0
    %159 = vmatpush1.msra.mxu0 0.0
    %160 = vmatprep.subr.mxu0 0.0
    %161 = vmatpush1.msra.mxu0 0.0
    %162 = vmatprep.subr.mxu0 0.0
    %163 = vmatpush1.msra.mxu0 0.0
    %164 = vmatprep.subr.mxu0 0.0
    %165 = vmatpush1.msra.mxu0 0.0
    %166 = vmatprep.subr.mxu0 0.0
    %167 = vmatpush1.msra.mxu0 0.0
    %168 = vmatprep.subr.mxu0 0.0
    %169 = vmatpush1.msra.mxu0 0.0
    %170 = vmatprep.subr.mxu0 0.0
    %171 = vmatpush1.msra.mxu0 0.0
    %172 = vmatprep.subr.mxu0 0.0
    %173 = vmatpush1.msra.mxu0 0.0
    %174 = vmatprep.subr.mxu0 0.0
    %175 = vmatpush1.msra.mxu0 0.0
    %176 = vmatprep.subr.mxu0 0.0
    %177 = vmatpush1.msra.mxu0 0.0
    %178 = vmatprep.subr.mxu0 0.0
    %179 = vmatpush1.msra.mxu0 0.0
    %180 = vmatprep.subr.mxu0 0.0
    %181 = vmatpush1.msra.mxu0 0.0
    %182 = vmatprep.subr.mxu0 0.0
    %183 = vmatpush1.msra.mxu0 0.0
    %184 = vmatprep.subr.mxu0 0.0
    %185 = vmatpush1.msra.mxu0 0.0
    %186 = vmatprep.subr.mxu0 0.0
    %187 = vmatpush1.msra.mxu0 0.0
    %188 = vmatprep.subr.mxu0 0.0
    %189 = vmatpush1.msra.mxu0 0.0
    %190 = vmatprep.subr.mxu0 0.0
    %191 = vmatpush1.msra.mxu0 0.0
    %192 = vmatprep.subr.mxu0 0.0
    %193 = vmatpush1.msra.mxu0 0.0
    %194 = vmatprep.subr.mxu0 0.0
    %195 = vmatpush1.msra.mxu0 0.0
    %196 = vmatprep.subr.mxu0 0.0
    %197 = vmatpush1.msra.mxu0 0.0
    %198 = vmatprep.subr.mxu0 0.0
    %199 = vmatpush1.msra.mxu0 0.0
    %200 = vmatprep.subr.mxu0 0.0
    %201 = vmatpush1.msra.mxu0 0.0
    %202 = vmatprep.subr.mxu0 0.0
    %203 = vmatpush1.msra.mxu0 0.0
    %204 = vmatprep.subr.mxu0 0.0
    %205 = vmatpush1.msra.mxu0 0.0
    %206 = vmatprep.subr.mxu0 0.0
    %207 = vmatpush1.msra.mxu0 0.0
    %208 = vmatprep.subr.mxu0 0.0
    %209 = vmatpush1.msra.mxu0 0.0
    %210 = vmatprep.subr.mxu0 0.0
    %211 = vmatpush1.msra.mxu0 0.0
    %212 = vmatprep.mubr.f32.mxu0 0.0
    %213 = vmatmul.mubr.f32.gmra.mrb[0].mxu0 %v146
    %v214 = vpop.f32.mrb[0].mxu0
    %v215 = vadd.f32 0.0, %v214
    %v216 = vpop.f32.mrb[0].mxu0
    %v217 = vadd.f32 0.0, %v216
    %218 = vdwg.mxu0
    %v221 = vcombine.low %v215, %v217
    %v223 = vunpack.c.l.s4 1983009808
    %v224 = vunpack.c.0.s8 %v223
    %v225 = vlaneseq
    %v226 = vshrl.u32 %v225, 7
    %v227 = vsub.s32 %v224, %v226
    %v228 = vrot.slane %v221, %v227
    %230 = vst [vmem:[#allocation2] sm:$0xf] %v228
    // Predicated region
    $region18: #{tpu_custom_call.1} parent=1 // pred_check
      _
    $region19: #{tpu_custom_call.1} parent=1 // pred_check_branch
      %232 = sbr.rel (0) target = $region21
    $region20: #{tpu_custom_call.1} parent=1 // pred_region
      %s234 = ssub.s32 64, 64
      %235 = vsyncadd [#allocation3], %s234
      %s237 = sshll.u32 [#allocation2], 4
      %s238 = int_to_ptr.vmem [resolvable:$true] %s237
      %240 = dma.vmem_to_hbm [thread:$0]  %s238, 64, %s4, [#allocation3]
    $region21: #{tpu_custom_call.1} parent=1 // pred_fallthru
      _
    // Predicated region
    $region22: #{tpu_custom_call.1} parent=1 // pred_check
      _
    $region23: #{tpu_custom_call.1} parent=1 // pred_check_branch
      %242 = sbr.rel (0) target = $region25
    $region24: #{tpu_custom_call.1} parent=1 // pred_region
      %243 = dma.done [#allocation3], 64
    $region25: #{tpu_custom_call.1} parent=1 // pred_fallthru
      _
    %244 = vsyncpa [#allocation3], 1

</llo_original>
